<compile_context>
chip_gen: v5e
topology: v5e:2x2
jax: 0.10.0
libtpu: 0.0.40
codegen_flags: <defaults>
</compile_context>

<pallas_src>
import jax
import jax.numpy as jnp
import numpy as np
from jax.experimental import pallas as pl
from jax.experimental.pallas import tpu as pltpu

# ---------------- problem sizes (small, consistent with the module) ----------
N = 64                               # number of graph nodes
IN_FEAT = 16                         # in_feat_dim
IN_LABEL = 8                         # in_label_dim
IN_CAT = IN_FEAT + IN_LABEL          # 24
HID = 32                             # hidden_dim
OUT = 8                              # out_dim
NUM_LAYERS = 1                       # num_layers
BR = (2 * NUM_LAYERS + 1) * HID      # 96, per-branch output dim
GATE_IN = 2 * BR                     # 192, gate_fc input dim
PAD = 128                            # lane-dense chunk width
HPAD = 3 * PAD                       # 384, padded fused-H width
CONST_COL = IN_CAT                   # xcat column holding constant 1.0 (-> H lane 127)
CONST_ROW = 32                       # w1c row holding wg2_row | bg2
XROWS = 40                           # padded xcat width == w1c row count


def robust_h2gcn_kernel(xcat_ref, astk_ref, w1c_ref, wg1_ref, wout2_ref,
                        out_ref, h_ref):
    f32 = jnp.float32

    # ---- fused two-branch H2GCN propagation (2 MXU matmuls) -----------------
    # h0 lanes: [0:32)=h0_feat, [32:64)=h0_label, 127 = 1.0 (bias lane), rest 0
    h0 = jnp.dot(xcat_ref[...], w1c_ref[...], preferred_element_type=f32)    # [N,128]
    # rows 0:N -> adj1 @ h0, rows N:2N -> adj2 @ h0
    h12 = jnp.dot(astk_ref[...], h0, preferred_element_type=f32)             # [2N,128]

    # H layout, per 128-lane hop chunk c (c = 0,1,2 <-> h0,h1,h2):
    #   lanes [c*128, c*128+32)   = hc_feat
    #   lanes [c*128+32, c*128+64)= hc_label
    #   lane 127 (chunk 0 only)   = 1.0  (drives the bias rows of wg1 / wout2)
    h_ref[:, 0:PAD] = h0
    h_ref[:, PAD:2 * PAD] = h12[:N, :]
    h_ref[:, 2 * PAD:] = h12[N:, :]
    H = h_ref[...]                                                            # [N,384]

    # ---- fused output projection, independent of the gate MLP ---------------
    # cols 0:128  -> h_feat  @ Wout + bout   (logits in lanes 0:8)
    # cols 128:256-> h_label @ Wout + bout   (logits in lanes 128:136)
    o2 = jnp.dot(H, wout2_ref[...], preferred_element_type=f32)              # [N,256]

    # ---- gate MLP: sigmoid(wg2 . relu(Wg1 . [h_feat,h_label] + bg1) + bg2) --
    # bg1 is folded into wg1 row 127 via the constant-1 lane of H.
    g1 = jnp.maximum(
        jnp.dot(H, wg1_ref[...], preferred_element_type=f32), 0.0)           # [N,32]
    wg2 = w1c_ref[CONST_ROW:CONST_ROW + 1, :HID]                             # [1,32]
    bg2 = w1c_ref[CONST_ROW:CONST_ROW + 1, HID:HID + 1]                      # [1,1]
    # VPU multiply + lane reduce instead of a 1-lane MXU matmul.
    g2 = jnp.sum(g1 * wg2, axis=-1, keepdims=True) + bg2                     # [N,1]
    gate = 1.0 / (1.0 + jnp.exp(-g2))                                        # [N,1]

    # ---- gated mix on the VPU; pack gate into the spare lanes of the slab ---
    slab = gate * o2[:, :PAD] + (1.0 - gate) * o2[:, PAD:]                   # [N,128]
    lane = jax.lax.broadcasted_iota(jnp.int32, (N, PAD), 1)
    out_ref[...] = jnp.where(lane < OUT, slab, gate)   # lanes 0:8 logits, 8:128 gate


def prepare_params(p):
    """One-time host-side packing of weights into the kernel's fused layouts."""
    w1f = np.asarray(p["w1f"], np.float32)
    w1l = np.asarray(p["w1l"], np.float32)
    wg1o = np.asarray(p["wg1"], np.float32)
    bg1 = np.asarray(p["bg1"], np.float32)
    wg2 = np.asarray(p["wg2"], np.float32)
    bg2 = np.asarray(p["bg2"], np.float32)
    wouto = np.asarray(p["wout"], np.float32)
    bout = np.asarray(p["bout"], np.float32)

    # fc1 weights (block-diagonal), constant-1 lane, and the gate head row.
    w1c = np.zeros((XROWS, PAD), np.float32)
    w1c[:IN_FEAT, :HID] = w1f
    w1c[IN_FEAT:IN_CAT, HID:2 * HID] = w1l
    w1c[CONST_COL, PAD - 1] = 1.0                 # h0 lane 127 == 1.0
    w1c[CONST_ROW, :HID] = wg2[:, 0]              # wg2 as a row (never touches h0)
    w1c[CONST_ROW, HID] = bg2[0, 0]

    # Gate fc1 rows permuted to the padded-H layout; bg1 in the constant row.
    # Original gate_input layout: [h0f h1f h2f | h0l h1l h2l] (chunks of HID).
    wg1 = np.zeros((HPAD, HID), np.float32)
    # Two-column-block output weight: feat rows -> cols 0:128, label -> 128:256.
    wout2 = np.zeros((HPAD, 2 * PAD), np.float32)
    for c in range(3):
        base = c * PAD
        wg1[base:base + HID, :] = wg1o[c * HID:(c + 1) * HID, :]
        wg1[base + HID:base + 2 * HID, :] = wg1o[(3 + c) * HID:(4 + c) * HID, :]
        wout2[base:base + HID, :OUT] = wouto[c * HID:(c + 1) * HID, :]
        wout2[base + HID:base + 2 * HID, PAD:PAD + OUT] = wouto[c * HID:(c + 1) * HID, :]
    wg1[PAD - 1, :] = bg1[0]                      # bg1 via the constant-1 lane
    wout2[PAD - 1, :OUT] = bout[0]                # bout folded into both blocks
    wout2[PAD - 1, PAD:PAD + OUT] = bout[0]

    return {"w1c": jnp.asarray(w1c), "wg1": jnp.asarray(wg1),
            "wout2": jnp.asarray(wout2)}


@jax.jit
def robust_h2gcn(x_feat, x_label, adj1, adj2, packed):
    """Single pallas_call; whole (tiny) problem resident in VMEM."""
    xcat = jnp.zeros((N, XROWS), jnp.float32)
    xcat = xcat.at[:, :IN_FEAT].set(x_feat)
    xcat = xcat.at[:, IN_FEAT:IN_CAT].set(x_label)
    xcat = xcat.at[:, CONST_COL].set(1.0)
    astk = jnp.concatenate([adj1, adj2], axis=0)                 # [2N, N]

    vmem = pl.BlockSpec(memory_space=pltpu.MemorySpace.VMEM)
    slab = pl.pallas_call(
        robust_h2gcn_kernel,
        out_shape=jax.ShapeDtypeStruct((N, PAD), jnp.float32),   # lane-dense slab
        in_specs=[vmem] * 5,
        out_specs=vmem,
        scratch_shapes=[pltpu.VMEM((N, HPAD), jnp.float32)],
    )(xcat, astk, packed["w1c"], packed["wg1"], packed["wout2"])

    out = slab[:, :OUT]
    gate_e = slab[:, OUT:OUT + BR]        # gate.expand_as(h_feat), [N, 96]
    return out, gate_e


def reference(x_feat, x_label, adj1, adj2, p):
    """Pure-JAX reference mirroring the PyTorch forward (eval mode)."""
    def branch(x, w):
        h0 = x @ w
        h1 = adj1 @ h0
        h2 = adj2 @ h0
        return jnp.concatenate([h0, h1, h2], axis=1)

    h_feat = branch(x_feat, p["w1f"])
    h_label = branch(x_label, p["w1l"])
    gate_in = jnp.concatenate([h_feat, h_label], axis=1)
    g1 = jnp.maximum(gate_in @ p["wg1"] + p["bg1"], 0.0)
    gate = jax.nn.sigmoid(g1 @ p["wg2"] + p["bg2"])              # [N, 1]
    gate_e = jnp.broadcast_to(gate, h_feat.shape)
    h_fused = gate_e * h_feat + (1.0 - gate_e) * h_label
    out = h_fused @ p["wout"] + p["bout"]
    return out, gate_e


if __name__ == "__main__":
    key = jax.random.PRNGKey(0)
    ks = jax.random.split(key, 12)

    # Inputs
    x_feat = jax.random.normal(ks[0], (N, IN_FEAT), jnp.float32)
    x_label = jax.random.normal(ks[1], (N, IN_LABEL), jnp.float32)
    # Dense row-stochastic "adjacency" matrices (torch.sparse.mm == dense matmul)
    a1_raw = jax.random.uniform(ks[2], (N, N), jnp.float32)
    a2_raw = jax.random.uniform(ks[3], (N, N), jnp.float32)
    adj1 = a1_raw / jnp.sum(a1_raw, axis=1, keepdims=True)
    adj2 = a2_raw / jnp.sum(a2_raw, axis=1, keepdims=True)

    # Deterministic parameter init (Linear weights stored as [in_dim, out_dim])
    def init(k, shape, fan_in):
        return jax.random.uniform(k, shape, jnp.float32,
                                  minval=-1.0, maxval=1.0) / jnp.sqrt(fan_in)

    params = {
        "w1f":  init(ks[4], (IN_FEAT, HID), IN_FEAT),
        "w1l":  init(ks[5], (IN_LABEL, HID), IN_LABEL),
        "wg1":  init(ks[6], (GATE_IN, HID), GATE_IN),
        "bg1":  init(ks[7], (1, HID), GATE_IN),
        "wg2":  init(ks[8], (HID, 1), HID),
        "bg2":  init(ks[9], (1, 1), HID),
        "wout": init(ks[10], (BR, OUT), BR),
        "bout": init(ks[11], (1, OUT), BR),
    }

    # One-time weight packing (hoisted out of the per-call forward).
    packed = prepare_params(params)

    out, gate = robust_h2gcn(x_feat, x_label, adj1, adj2, packed)
    out = jax.block_until_ready(out)
    gate = jax.block_until_ready(gate)

    out_ref, gate_ref = reference(x_feat, x_label, adj1, adj2, params)
    assert out.shape == (N, OUT) and gate.shape == (N, BR)
    assert jnp.allclose(out, out_ref, atol=1e-4, rtol=1e-4)
    assert jnp.allclose(gate, gate_ref, atol=1e-5, rtol=1e-5)

    print("KERNEL_OK")
</pallas_src>

<mosaic_0001>
module attributes {stable_mosaic.version = 11 : i64} {
  func.func @robust_h2gcn_kernel(%arg0: memref<64x40xf32, #tpu.memory_space<vmem>>, %arg1: memref<128x64xf32, #tpu.memory_space<vmem>>, %arg2: memref<40x128xf32, #tpu.memory_space<vmem>>, %arg3: memref<384x32xf32, #tpu.memory_space<vmem>>, %arg4: memref<384x256xf32, #tpu.memory_space<vmem>>, %arg5: memref<64x128xf32, #tpu.memory_space<vmem>>, %arg6: memref<64x384xf32, #tpu.memory_space<vmem>>) attributes {dimension_semantics = [], scalar_prefetch = 0 : i64, scratch_operands = 1 : i64, tpu.core_type = #tpu.core_type<tc>} {
    %c0 = arith.constant 0 : index
    %c0_0 = arith.constant 0 : index
    %0 = vector.load %arg0[%c0, %c0_0] : memref<64x40xf32, #tpu.memory_space<vmem>>, vector<64x40xf32>
    %c0_1 = arith.constant 0 : index
    %c0_2 = arith.constant 0 : index
    %1 = vector.load %arg2[%c0_1, %c0_2] : memref<40x128xf32, #tpu.memory_space<vmem>>, vector<40x128xf32>
    %cst = arith.constant dense<0.000000e+00> : vector<64x128xf32>
    %2 = tpu.matmul %0, %1, %cst {dimension_numbers = #tpu.dot_dimension_numbers<[1], [0], [0], [1], [0, 0, 1, 1], [], []>} : vector<64x40xf32>, vector<40x128xf32>, vector<64x128xf32> -> vector<64x128xf32>
    %c0_3 = arith.constant 0 : index
    %c0_4 = arith.constant 0 : index
    %3 = vector.load %arg1[%c0_3, %c0_4] : memref<128x64xf32, #tpu.memory_space<vmem>>, vector<128x64xf32>
    %cst_5 = arith.constant dense<0.000000e+00> : vector<128x128xf32>
    %4 = tpu.matmul %3, %2, %cst_5 {dimension_numbers = #tpu.dot_dimension_numbers<[1], [0], [0], [1], [0, 0, 1, 1], [], []>} : vector<128x64xf32>, vector<64x128xf32>, vector<128x128xf32> -> vector<128x128xf32>
    %c0_6 = arith.constant 0 : index
    %c0_7 = arith.constant 0 : index
    %5 = vector.load %arg6[%c0_6, %c0_7] : memref<64x384xf32, #tpu.memory_space<vmem>>, vector<64x128xf32>
    tpu.vector_store %arg6[%c0_6, %c0_7], %2 {strides = array<i32>} : memref<64x384xf32, #tpu.memory_space<vmem>>, vector<64x128xf32>,
    %6 = vector.extract_strided_slice %4 {offsets = [0, 0], sizes = [64, 128], strides = [1, 1]} : vector<128x128xf32> to vector<64x128xf32>
    %c0_8 = arith.constant 0 : index
    %c128 = arith.constant 128 : index
    %7 = vector.load %arg6[%c0_8, %c128] : memref<64x384xf32, #tpu.memory_space<vmem>>, vector<64x128xf32>
    tpu.vector_store %arg6[%c0_8, %c128], %6 {strides = array<i32>} : memref<64x384xf32, #tpu.memory_space<vmem>>, vector<64x128xf32>,
    %8 = vector.extract_strided_slice %4 {offsets = [64, 0], sizes = [64, 128], strides = [1, 1]} : vector<128x128xf32> to vector<64x128xf32>
    %c0_9 = arith.constant 0 : index
    %c256 = arith.constant 256 : index
    %9 = vector.load %arg6[%c0_9, %c256] : memref<64x384xf32, #tpu.memory_space<vmem>>, vector<64x128xf32>
    tpu.vector_store %arg6[%c0_9, %c256], %8 {strides = array<i32>} : memref<64x384xf32, #tpu.memory_space<vmem>>, vector<64x128xf32>,
    %c0_10 = arith.constant 0 : index
    %c0_11 = arith.constant 0 : index
    %10 = vector.load %arg6[%c0_10, %c0_11] : memref<64x384xf32, #tpu.memory_space<vmem>>, vector<64x384xf32>
    %c0_12 = arith.constant 0 : index
    %c0_13 = arith.constant 0 : index
    %11 = vector.load %arg4[%c0_12, %c0_13] : memref<384x256xf32, #tpu.memory_space<vmem>>, vector<384x256xf32>
    %cst_14 = arith.constant dense<0.000000e+00> : vector<64x256xf32>
    %12 = tpu.matmul %10, %11, %cst_14 {dimension_numbers = #tpu.dot_dimension_numbers<[1], [0], [0], [1], [0, 0, 1, 1], [], []>} : vector<64x384xf32>, vector<384x256xf32>, vector<64x256xf32> -> vector<64x256xf32>
    %c0_15 = arith.constant 0 : index
    %c0_16 = arith.constant 0 : index
    %13 = vector.load %arg3[%c0_15, %c0_16] : memref<384x32xf32, #tpu.memory_space<vmem>>, vector<384x32xf32>
    %cst_17 = arith.constant dense<0.000000e+00> : vector<64x32xf32>
    %14 = tpu.matmul %10, %13, %cst_17 {dimension_numbers = #tpu.dot_dimension_numbers<[1], [0], [0], [1], [0, 0, 1, 1], [], []>} : vector<64x384xf32>, vector<384x32xf32>, vector<64x32xf32> -> vector<64x32xf32>
    %cst_18 = arith.constant 0.000000e+00 : f32
    %15 = vector.broadcast %cst_18 : f32 to vector<64x32xf32>
    %16 = arith.maximumf %14, %15 : vector<64x32xf32>
    %c32 = arith.constant 32 : index
    %c0_19 = arith.constant 0 : index
    %17 = vector.load %arg2[%c32, %c0_19] : memref<40x128xf32, #tpu.memory_space<vmem>>, vector<1x32xf32>
    %c32_20 = arith.constant 32 : index
    %c32_21 = arith.constant 32 : index
    %18 = vector.load %arg2[%c32_20, %c32_21] : memref<40x128xf32, #tpu.memory_space<vmem>>, vector<1x1xf32>
    %19 = vector.broadcast %17 : vector<1x32xf32> to vector<64x32xf32>
    %20 = arith.mulf %16, %19 : vector<64x32xf32>
    %cst_22 = arith.constant dense<0.000000e+00> : vector<64xf32>
    %21 = vector.multi_reduction <add>, %20, %cst_22 [1] : vector<64x32xf32> to vector<64xf32>
    %22 = vector.shape_cast %21 : vector<64xf32> to vector<64x1xf32>
    %23 = vector.broadcast %18 : vector<1x1xf32> to vector<64x1xf32>
    %24 = arith.addf %22, %23 : vector<64x1xf32>
    %cst_23 = arith.constant 0.000000e+00 : f32
    %25 = vector.broadcast %cst_23 : f32 to vector<64x1xf32>
    %26 = arith.subf %25, %24 : vector<64x1xf32>
    %27 = math.exp %26 : vector<64x1xf32>
    %cst_24 = arith.constant 1.000000e+00 : f32
    %28 = vector.broadcast %cst_24 : f32 to vector<64x1xf32>
    %29 = arith.addf %28, %27 : vector<64x1xf32>
    %cst_25 = arith.constant 1.000000e+00 : f32
    %30 = vector.broadcast %cst_25 : f32 to vector<64x1xf32>
    %31 = arith.divf %30, %29 : vector<64x1xf32>
    %32 = vector.extract_strided_slice %12 {offsets = [0, 0], sizes = [64, 128], strides = [1, 1]} : vector<64x256xf32> to vector<64x128xf32>
    %33 = vector.broadcast %31 : vector<64x1xf32> to vector<64x128xf32>
    %34 = arith.mulf %33, %32 : vector<64x128xf32>
    %cst_26 = arith.constant 1.000000e+00 : f32
    %35 = vector.broadcast %cst_26 : f32 to vector<64x1xf32>
    %36 = arith.subf %35, %31 : vector<64x1xf32>
    %37 = vector.extract_strided_slice %12 {offsets = [0, 128], sizes = [64, 128], strides = [1, 1]} : vector<64x256xf32> to vector<64x128xf32>
    %38 = vector.broadcast %36 : vector<64x1xf32> to vector<64x128xf32>
    %39 = arith.mulf %38, %37 : vector<64x128xf32>
    %40 = arith.addf %34, %39 : vector<64x128xf32>
    %41 = tpu.iota {dimensions = array<i32: 1>} : vector<64x128xi32>
    %c8_i32 = arith.constant 8 : i32
    %42 = vector.broadcast %c8_i32 : i32 to vector<64x128xi32>
    %43 = arith.cmpi slt, %41, %42 : vector<64x128xi32>
    %44 = vector.shape_cast %31 : vector<64x1xf32> to vector<64x1xf32>
    %45 = vector.broadcast %44 : vector<64x1xf32> to vector<64x128xf32>
    %46 = arith.select %43, %40, %45 : vector<64x128xi1>, vector<64x128xf32>
    %c0_27 = arith.constant 0 : index
    %c0_28 = arith.constant 0 : index
    %47 = vector.load %arg5[%c0_27, %c0_28] : memref<64x128xf32, #tpu.memory_space<vmem>>, vector<64x128xf32>
    tpu.vector_store %arg5[%c0_27, %c0_28], %46 {strides = array<i32>} : memref<64x128xf32, #tpu.memory_space<vmem>>, vector<64x128xf32>,
    return
  }
}

</mosaic_0001>

<llo_original>
// kernel: robust_h2gcn.1
$region0: #{robust_h2gcn.1}
  #allocation0 [shape = 'u32[]', space=smem, size = 0x4, offset = 0x4, fixed_abs, tag = 'smem constant byte address 0x4 - core index']
  #allocation1 [shape = 'u32[72,128]{1,0:T(1,128)}', space=vmem, size = 0x9000, scoped, tag = 'internal scratch']
  #allocation2 [shape = 'f32[64,384]{1,0:T(8,128)}', space=vmem, size = 0x18000, scoped, tag = 'scratch operand']
  %s0 = inlined_call_operand.vmem [shape: f32[64,40], index: 0, kind: input, shape index: {}]
  %s1 = inlined_call_operand.vmem [shape: f32[128,64], index: 1, kind: input, shape index: {}]
  %s2 = inlined_call_operand.vmem [shape: f32[40,128], index: 2, kind: input, shape index: {}]
  %s3 = inlined_call_operand.vmem [shape: f32[384,32], index: 3, kind: input, shape index: {}]
  %s4 = inlined_call_operand.hbm [shape: f32[384,256], index: 4, kind: input, shape index: {}]
  %s5 = inlined_call_operand.vmem [shape: f32[64,128], index: 5, kind: output, shape index: {}]
  %s6 = sld [smem:[#allocation0]]
  $region34: #{robust_h2gcn.1} parent=0
    _
  %s8 = ssub.s32 1, %s6
  %s9 = scalar_select 0, %s8, %s6
  $region1: #{robust_h2gcn.1} parent=0
    #allocation3 [shape = 'u8[393216]{0}', space=vmem, size = 0x60000, scoped, tag = 'input window, operand 4, single buffered']
    #allocation4 [shape = 's32[1]{0}', space=sflag, size = 0x4, scoped, tag = 'scoped memory for robust_h2gcn.1']
    %10 = vsyncpa [#allocation4], 0
    // Predicated region
    $region2: #{robust_h2gcn.1} parent=1 // pred_check
      _
    $region3: #{robust_h2gcn.1} parent=1 // pred_check_branch
      %12 = sbr.rel (0) target = $region5
    $region4: #{robust_h2gcn.1} parent=1 // pred_region
      _
    $region5: #{robust_h2gcn.1} parent=1 // pred_fallthru
      _
    // Predicated region
    $region6: #{robust_h2gcn.1} parent=1 // pred_check
      _
    $region7: #{robust_h2gcn.1} parent=1 // pred_check_branch
      %14 = sbr.rel (0) target = $region9
    $region8: #{robust_h2gcn.1} parent=1 // pred_region
      _
    $region9: #{robust_h2gcn.1} parent=1 // pred_fallthru
      _
    // Predicated region
    $region10: #{robust_h2gcn.1} parent=1 // pred_check
      _
    $region11: #{robust_h2gcn.1} parent=1 // pred_check_branch
      %16 = sbr.rel (0) target = $region13
    $region12: #{robust_h2gcn.1} parent=1 // pred_region
      _
    $region13: #{robust_h2gcn.1} parent=1 // pred_fallthru
      _
    // Predicated region
    $region14: #{robust_h2gcn.1} parent=1 // pred_check
      _
    $region15: #{robust_h2gcn.1} parent=1 // pred_check_branch
      %18 = sbr.rel (0) target = $region17
    $region16: #{robust_h2gcn.1} parent=1 // pred_region
      _
    $region17: #{robust_h2gcn.1} parent=1 // pred_fallthru
      _
    // Predicated region
    $region18: #{robust_h2gcn.1} parent=1 // pred_check
      _
    $region19: #{robust_h2gcn.1} parent=1 // pred_check_branch
      %20 = sbr.rel (0) target = $region21
    $region20: #{robust_h2gcn.1} parent=1 // pred_region
      %22 = vsyncadd [#allocation4], 0
      %s23 = sshll.u32 %s4, 4
      %s24 = int_to_ptr.hbm [resolvable:$true] %s23
      %s25 = sshll.u32 [#allocation3], 4
      %s26 = int_to_ptr.vmem [resolvable:$true] %s25
      %31 = dma.hbm_to_vmem [thread:$0]  %s24, 12288, %s26, [#allocation4], 256, 256, 16
    $region21: #{robust_h2gcn.1} parent=1 // pred_fallthru
      _
    // Predicated region
    $region22: #{robust_h2gcn.1} parent=1 // pred_check
      _
    $region23: #{robust_h2gcn.1} parent=1 // pred_check_branch
      %33 = sbr.rel (0) target = $region25
    $region24: #{robust_h2gcn.1} parent=1 // pred_region
      %35 = dma.done [#allocation4], 12288
    $region25: #{robust_h2gcn.1} parent=1 // pred_fallthru
      _
    %v36 = vld [vmem:[%s0] sm:$0xff]
    %v37 = vld [vmem:[%s0 + $0x8] sm:$0xff]
    %v38 = vld [vmem:[%s0 + $0x10] sm:$0xff]
    %v39 = vld [vmem:[%s0 + $0x18] sm:$0xff]
    %v40 = vld [vmem:[%s0 + $0x20] sm:$0xff]
    %v41 = vld [vmem:[%s0 + $0x28] sm:$0xff]
    %v42 = vld [vmem:[%s0 + $0x30] sm:$0xff]
    %v43 = vld [vmem:[%s0 + $0x38] sm:$0xff]
    %v44 = vld [vmem:[%s2] sm:$0xff]
    %v45 = vld [vmem:[%s2 + $0x8] sm:$0xff]
    %v46 = vld [vmem:[%s2 + $0x10] sm:$0xff]
    %v47 = vld [vmem:[%s2 + $0x18] sm:$0xff]
    %v48 = vld [vmem:[%s2 + $0x20] sm:$0xff]
    %vm49 = vcmask 326656
    %v51 = vsel %vm49, %v36, 0
    %v54 = vsel %vm49, %v37, 0
    %v57 = vsel %vm49, %v38, 0
    %v60 = vsel %vm49, %v39, 0
    %v63 = vsel %vm49, %v40, 0
    %v66 = vsel %vm49, %v41, 0
    %v69 = vsel %vm49, %v42, 0
    %v72 = vsel %vm49, %v43, 0
    %74 = vmatpush.msra.mxu0 0.0
    %75 = vmatpush.msra.mxu0 0.0
    %76 = vmatpush.msra.mxu0 0.0
    %77 = vmatpush.msra.mxu0 0.0
    %78 = vmatpush.msra.mxu0 0.0
    %79 = vmatpush.msra.mxu0 0.0
    %80 = vmatpush.msra.mxu0 0.0
    %81 = vmatpush.msra.mxu0 0.0
    %82 = vmatpush.msra.mxu0 0.0
    %83 = vmatpush.msra.mxu0 0.0
    %84 = vmatpush.msra.mxu0 0.0
    %85 = vmatpush.msra.mxu0 %v48
    %86 = vmatpush.msra.mxu0 %v47
    %87 = vmatpush.msra.mxu0 %v46
    %88 = vmatpush.msra.mxu0 %v45
    %89 = vmatpush.msra.mxu0 %v44
    %90 = vmatmul.f32.gmra.mxu0 %v51
    %v91 = vpop.f32.mrf.mxu0
    %v92 = vadd.f32 0.0, %v91
    %93 = vmatmul.f32.gmra.mxu0 %v54
    %v94 = vpop.f32.mrf.mxu0
    %v95 = vadd.f32 0.0, %v94
    %96 = vmatmul.f32.gmra.mxu0 %v57
    %v97 = vpop.f32.mrf.mxu0
    %v98 = vadd.f32 0.0, %v97
    %99 = vmatmul.f32.gmra.mxu0 %v60
    %v100 = vpop.f32.mrf.mxu0
    %v101 = vadd.f32 0.0, %v100
    %102 = vmatmul.f32.gmra.mxu0 %v63
    %v103 = vpop.f32.mrf.mxu0
    %v104 = vadd.f32 0.0, %v103
    %105 = vmatmul.f32.gmra.mxu0 %v66
    %v106 = vpop.f32.mrf.mxu0
    %v107 = vadd.f32 0.0, %v106
    %108 = vmatmul.f32.gmra.mxu0 %v69
    %v109 = vpop.f32.mrf.mxu0
    %v110 = vadd.f32 0.0, %v109
    %111 = vmatmul.f32.gmra.mxu0 %v72
    %v112 = vpop.f32.mrf.mxu0
    %v113 = vadd.f32 0.0, %v112
    %114 = vdwg.mxu0
    %v115 = vld [vmem:[%s1] sm:$0xff]
    %v116 = vld [vmem:[%s1 + $0x8] sm:$0xff]
    %v117 = vld [vmem:[%s1 + $0x10] sm:$0xff]
    %v118 = vld [vmem:[%s1 + $0x18] sm:$0xff]
    %v119 = vld [vmem:[%s1 + $0x20] sm:$0xff]
    %v120 = vld [vmem:[%s1 + $0x28] sm:$0xff]
    %v121 = vld [vmem:[%s1 + $0x30] sm:$0xff]
    %v122 = vld [vmem:[%s1 + $0x38] sm:$0xff]
    %v123 = vld [vmem:[%s1 + $0x40] sm:$0xff]
    %v124 = vld [vmem:[%s1 + $0x48] sm:$0xff]
    %v125 = vld [vmem:[%s1 + $0x50] sm:$0xff]
    %v126 = vld [vmem:[%s1 + $0x58] sm:$0xff]
    %v127 = vld [vmem:[%s1 + $0x60] sm:$0xff]
    %v128 = vld [vmem:[%s1 + $0x68] sm:$0xff]
    %v129 = vld [vmem:[%s1 + $0x70] sm:$0xff]
    %v130 = vld [vmem:[%s1 + $0x78] sm:$0xff]
    %vm131 = vcmask 523264
    %v133 = vsel %vm131, %v115, 0
    %v136 = vsel %vm131, %v116, 0
    %v139 = vsel %vm131, %v117, 0
    %v142 = vsel %vm131, %v118, 0
    %v145 = vsel %vm131, %v119, 0
    %v148 = vsel %vm131, %v120, 0
    %v151 = vsel %vm131, %v121, 0
    %v154 = vsel %vm131, %v122, 0
    %v157 = vsel %vm131, %v123, 0
    %v160 = vsel %vm131, %v124, 0
    %v163 = vsel %vm131, %v125, 0
    %v166 = vsel %vm131, %v126, 0
    %v169 = vsel %vm131, %v127, 0
    %v172 = vsel %vm131, %v128, 0
    %v175 = vsel %vm131, %v129, 0
    %v178 = vsel %vm131, %v130, 0
    %180 = vmatpush.msra.mxu0 0.0
    %181 = vmatpush.msra.mxu0 0.0
    %182 = vmatpush.msra.mxu0 0.0
    %183 = vmatpush.msra.mxu0 0.0
    %184 = vmatpush.msra.mxu0 0.0
    %185 = vmatpush.msra.mxu0 0.0
    %186 = vmatpush.msra.mxu0 0.0
    %187 = vmatpush.msra.mxu0 0.0
    %188 = vmatpush.msra.mxu0 %v113
    %189 = vmatpush.msra.mxu0 %v110
    %190 = vmatpush.msra.mxu0 %v107
    %191 = vmatpush.msra.mxu0 %v104
    %192 = vmatpush.msra.mxu0 %v101
    %193 = vmatpush.msra.mxu0 %v98
    %194 = vmatpush.msra.mxu0 %v95
    %195 = vmatpush.msra.mxu0 %v92
    %196 = vmatmul.f32.gmra.mxu0 %v133
    %v197 = vpop.f32.mrf.mxu0
    %v198 = vadd.f32 0.0, %v197
    %199 = vmatmul.f32.gmra.mxu0 %v136
    %v200 = vpop.f32.mrf.mxu0
    %v201 = vadd.f32 0.0, %v200
    %202 = vmatmul.f32.gmra.mxu0 %v139
    %v203 = vpop.f32.mrf.mxu0
    %v204 = vadd.f32 0.0, %v203
    %205 = vmatmul.f32.gmra.mxu0 %v142
    %v206 = vpop.f32.mrf.mxu0
    %v207 = vadd.f32 0.0, %v206
    %208 = vmatmul.f32.gmra.mxu0 %v145
    %v209 = vpop.f32.mrf.mxu0
    %v210 = vadd.f32 0.0, %v209
    %211 = vmatmul.f32.gmra.mxu0 %v148
    %v212 = vpop.f32.mrf.mxu0
    %v213 = vadd.f32 0.0, %v212
    %214 = vmatmul.f32.gmra.mxu0 %v151
    %v215 = vpop.f32.mrf.mxu0
    %v216 = vadd.f32 0.0, %v215
    %217 = vmatmul.f32.gmra.mxu0 %v154
    %v218 = vpop.f32.mrf.mxu0
    %v219 = vadd.f32 0.0, %v218
    %220 = vmatmul.f32.gmra.mxu0 %v157
    %v221 = vpop.f32.mrf.mxu0
    %v222 = vadd.f32 0.0, %v221
    %223 = vmatmul.f32.gmra.mxu0 %v160
    %v224 = vpop.f32.mrf.mxu0
    %v225 = vadd.f32 0.0, %v224
    %226 = vmatmul.f32.gmra.mxu0 %v163
    %v227 = vpop.f32.mrf.mxu0
    %v228 = vadd.f32 0.0, %v227
    %229 = vmatmul.f32.gmra.mxu0 %v166
    %v230 = vpop.f32.mrf.mxu0
    %v231 = vadd.f32 0.0, %v230
    %232 = vmatmul.f32.gmra.mxu0 %v169
    %v233 = vpop.f32.mrf.mxu0
    %v234 = vadd.f32 0.0, %v233
    %235 = vmatmul.f32.gmra.mxu0 %v172
    %v236 = vpop.f32.mrf.mxu0
    %v237 = vadd.f32 0.0, %v236
    %238 = vmatmul.f32.gmra.mxu0 %v175
    %v239 = vpop.f32.mrf.mxu0
    %v240 = vadd.f32 0.0, %v239
    %241 = vmatmul.f32.gmra.mxu0 %v178
    %v242 = vpop.f32.mrf.mxu0
    %v243 = vadd.f32 0.0, %v242
    %244 = vdwg.mxu0
    %245 = vst [vmem:[#allocation2] sm:$0xff] %v92
    %246 = vst [vmem:[#allocation2 + $0x18] sm:$0xff] %v95
    %247 = vst [vmem:[#allocation2 + $0x30] sm:$0xff] %v98
    %248 = vst [vmem:[#allocation2 + $0x48] sm:$0xff] %v101
    %249 = vst [vmem:[#allocation2 + $0x60] sm:$0xff] %v104
    %250 = vst [vmem:[#allocation2 + $0x78] sm:$0xff] %v107
    %251 = vst [vmem:[#allocation2 + $0x90] sm:$0xff] %v110
    %252 = vst [vmem:[#allocation2 + $0xa8] sm:$0xff] %v113
    %253 = vst [vmem:[#allocation2 + $0x8] sm:$0xff] %v198
    %254 = vst [vmem:[#allocation2 + $0x20] sm:$0xff] %v201
    %255 = vst [vmem:[#allocation2 + $0x38] sm:$0xff] %v204
    %256 = vst [vmem:[#allocation2 + $0x50] sm:$0xff] %v207
    %257 = vst [vmem:[#allocation2 + $0x68] sm:$0xff] %v210
    %258 = vst [vmem:[#allocation2 + $0x80] sm:$0xff] %v213
    %259 = vst [vmem:[#allocation2 + $0x98] sm:$0xff] %v216
    %260 = vst [vmem:[#allocation2 + $0xb0] sm:$0xff] %v219
    %261 = vst [vmem:[#allocation2 + $0x10] sm:$0xff] %v222
    %262 = vst [vmem:[#allocation2 + $0x28] sm:$0xff] %v225
    %263 = vst [vmem:[#allocation2 + $0x40] sm:$0xff] %v228
    %264 = vst [vmem:[#allocation2 + $0x58] sm:$0xff] %v231
    %265 = vst [vmem:[#allocation2 + $0x70] sm:$0xff] %v234
    %266 = vst [vmem:[#allocation2 + $0x88] sm:$0xff] %v237
    %267 = vst [vmem:[#allocation2 + $0xa0] sm:$0xff] %v240
    %268 = vst [vmem:[#allocation2 + $0xb8] sm:$0xff] %v243
    %v269 = vld [vmem:[#allocation2] sm:$0xff]
    %v270 = vld [vmem:[#allocation2 + $0x8] sm:$0xff]
    %v271 = vld [vmem:[#allocation2 + $0x10] sm:$0xff]
    %v272 = vld [vmem:[#allocation2 + $0x18] sm:$0xff]
    %v273 = vld [vmem:[#allocation2 + $0x20] sm:$0xff]
    %v274 = vld [vmem:[#allocation2 + $0x28] sm:$0xff]
    %v275 = vld [vmem:[#allocation2 + $0x30] sm:$0xff]
    %v276 = vld [vmem:[#allocation2 + $0x38] sm:$0xff]
    %v277 = vld [vmem:[#allocation2 + $0x40] sm:$0xff]
    %v278 = vld [vmem:[#allocation2 + $0x48] sm:$0xff]
    %v279 = vld [vmem:[#allocation2 + $0x50] sm:$0xff]
    %v280 = vld [vmem:[#allocation2 + $0x58] sm:$0xff]
    %v281 = vld [vmem:[#allocation2 + $0x60] sm:$0xff]
    %v282 = vld [vmem:[#allocation2 + $0x68] sm:$0xff]
    %v283 = vld [vmem:[#allocation2 + $0x70] sm:$0xff]
    %v284 = vld [vmem:[#allocation2 + $0x78] sm:$0xff]
    %v285 = vld [vmem:[#allocation2 + $0x80] sm:$0xff]
    %v286 = vld [vmem:[#allocation2 + $0x88] sm:$0xff]
    %v287 = vld [vmem:[#allocation2 + $0x90] sm:$0xff]
    %v288 = vld [vmem:[#allocation2 + $0x98] sm:$0xff]
    %v289 = vld [vmem:[#allocation2 + $0xa0] sm:$0xff]
    %v290 = vld [vmem:[#allocation2 + $0xa8] sm:$0xff]
    %v291 = vld [vmem:[#allocation2 + $0xb0] sm:$0xff]
    %v292 = vld [vmem:[#allocation2 + $0xb8] sm:$0xff]
    %v293 = vld [vmem:[#allocation3] sm:$0xff]
    %v294 = vld [vmem:[#allocation3 + $0x8] sm:$0xff]
    %v295 = vld [vmem:[#allocation3 + $0x10] sm:$0xff]
    %v296 = vld [vmem:[#allocation3 + $0x18] sm:$0xff]
    %v297 = vld [vmem:[#allocation3 + $0x20] sm:$0xff]
    %v298 = vld [vmem:[#allocation3 + $0x28] sm:$0xff]
    %v299 = vld [vmem:[#allocation3 + $0x30] sm:$0xff]
    %v300 = vld [vmem:[#allocation3 + $0x38] sm:$0xff]
    %v301 = vld [vmem:[#allocation3 + $0x40] sm:$0xff]
    %v302 = vld [vmem:[#allocation3 + $0x48] sm:$0xff]
    %v303 = vld [vmem:[#allocation3 + $0x50] sm:$0xff]
    %v304 = vld [vmem:[#allocation3 + $0x58] sm:$0xff]
    %v305 = vld [vmem:[#allocation3 + $0x60] sm:$0xff]
    %v306 = vld [vmem:[#allocation3 + $0x68] sm:$0xff]
    %v307 = vld [vmem:[#allocation3 + $0x70] sm:$0xff]
    %v308 = vld [vmem:[#allocation3 + $0x78] sm:$0xff]
    %v309 = vld [vmem:[#allocation3 + $0x80] sm:$0xff]
    %v310 = vld [vmem:[#allocation3 + $0x88] sm:$0xff]
    %v311 = vld [vmem:[#allocation3 + $0x90] sm:$0xff]
    %v312 = vld [vmem:[#allocation3 + $0x98] sm:$0xff]
    %v313 = vld [vmem:[#allocation3 + $0xa0] sm:$0xff]
    %v314 = vld [vmem:[#allocation3 + $0xa8] sm:$0xff]
    %v315 = vld [vmem:[#allocation3 + $0xb0] sm:$0xff]
    %v316 = vld [vmem:[#allocation3 + $0xb8] sm:$0xff]
    %v317 = vld [vmem:[#allocation3 + $0xc0] sm:$0xff]
    %v318 = vld [vmem:[#allocation3 + $0xc8] sm:$0xff]
    %v319 = vld [vmem:[#allocation3 + $0xd0] sm:$0xff]
    %v320 = vld [vmem:[#allocation3 + $0xd8] sm:$0xff]
    %v321 = vld [vmem:[#allocation3 + $0xe0] sm:$0xff]
    %v322 = vld [vmem:[#allocation3 + $0xe8] sm:$0xff]
    %v323 = vld [vmem:[#allocation3 + $0xf0] sm:$0xff]
    %v324 = vld [vmem:[#allocation3 + $0xf8] sm:$0xff]
    %v325 = vld [vmem:[#allocation3 + $0x100] sm:$0xff]
    %v326 = vld [vmem:[#allocation3 + $0x108] sm:$0xff]
    %v327 = vld [vmem:[#allocation3 + $0x110] sm:$0xff]
    %v328 = vld [vmem:[#allocation3 + $0x118] sm:$0xff]
    %v329 = vld [vmem:[#allocation3 + $0x120] sm:$0xff]
    %v330 = vld [vmem:[#allocation3 + $0x128] sm:$0xff]
    %v331 = vld [vmem:[#allocation3 + $0x130] sm:$0xff]
    %v332 = vld [vmem:[#allocation3 + $0x138] sm:$0xff]
    %v333 = vld [vmem:[#allocation3 + $0x140] sm:$0xff]
    %v334 = vld [vmem:[#allocation3 + $0x148] sm:$0xff]
    %v335 = vld [vmem:[#allocation3 + $0x150] sm:$0xff]
    %v336 = vld [vmem:[#allocation3 + $0x158] sm:$0xff]
    %v337 = vld [vmem:[#allocation3 + $0x160] sm:$0xff]
    %v338 = vld [vmem:[#allocation3 + $0x168] sm:$0xff]
    %v339 = vld [vmem:[#allocation3 + $0x170] sm:$0xff]
    %v340 = vld [vmem:[#allocation3 + $0x178] sm:$0xff]
    %v341 = vld [vmem:[#allocation3 + $0x180] sm:$0xff]
    %v342 = vld [vmem:[#allocation3 + $0x188] sm:$0xff]
    %v343 = vld [vmem:[#allocation3 + $0x190] sm:$0xff]
    %v344 = vld [vmem:[#allocation3 + $0x198] sm:$0xff]
    %v345 = vld [vmem:[#allocation3 + $0x1a0] sm:$0xff]
    %v346 = vld [vmem:[#allocation3 + $0x1a8] sm:$0xff]
    %v347 = vld [vmem:[#allocation3 + $0x1b0] sm:$0xff]
    %v348 = vld [vmem:[#allocation3 + $0x1b8] sm:$0xff]
    %v349 = vld [vmem:[#allocation3 + $0x1c0] sm:$0xff]
    %v350 = vld [vmem:[#allocation3 + $0x1c8] sm:$0xff]
    %v351 = vld [vmem:[#allocation3 + $0x1d0] sm:$0xff]
    %v352 = vld [vmem:[#allocation3 + $0x1d8] sm:$0xff]
    %v353 = vld [vmem:[#allocation3 + $0x1e0] sm:$0xff]
    %v354 = vld [vmem:[#allocation3 + $0x1e8] sm:$0xff]
    %v355 = vld [vmem:[#allocation3 + $0x1f0] sm:$0xff]
    %v356 = vld [vmem:[#allocation3 + $0x1f8] sm:$0xff]
    %v357 = vld [vmem:[#allocation3 + $0x200] sm:$0xff]
    %v358 = vld [vmem:[#allocation3 + $0x208] sm:$0xff]
    %v359 = vld [vmem:[#allocation3 + $0x210] sm:$0xff]
    %v360 = vld [vmem:[#allocation3 + $0x218] sm:$0xff]
    %v361 = vld [vmem:[#allocation3 + $0x220] sm:$0xff]
    %v362 = vld [vmem:[#allocation3 + $0x228] sm:$0xff]
    %v363 = vld [vmem:[#allocation3 + $0x230] sm:$0xff]
    %v364 = vld [vmem:[#allocation3 + $0x238] sm:$0xff]
    %v365 = vld [vmem:[#allocation3 + $0x240] sm:$0xff]
    %v366 = vld [vmem:[#allocation3 + $0x248] sm:$0xff]
    %v367 = vld [vmem:[#allocation3 + $0x250] sm:$0xff]
    %v368 = vld [vmem:[#allocation3 + $0x258] sm:$0xff]
    %v369 = vld [vmem:[#allocation3 + $0x260] sm:$0xff]
    %v370 = vld [vmem:[#allocation3 + $0x268] sm:$0xff]
    %v371 = vld [vmem:[#allocation3 + $0x270] sm:$0xff]
    %v372 = vld [vmem:[#allocation3 + $0x278] sm:$0xff]
    %v373 = vld [vmem:[#allocation3 + $0x280] sm:$0xff]
    %v374 = vld [vmem:[#allocation3 + $0x288] sm:$0xff]
    %v375 = vld [vmem:[#allocation3 + $0x290] sm:$0xff]
    %v376 = vld [vmem:[#allocation3 + $0x298] sm:$0xff]
    %v377 = vld [vmem:[#allocation3 + $0x2a0] sm:$0xff]
    %v378 = vld [vmem:[#allocation3 + $0x2a8] sm:$0xff]
    %v379 = vld [vmem:[#allocation3 + $0x2b0] sm:$0xff]
    %v380 = vld [vmem:[#allocation3 + $0x2b8] sm:$0xff]
    %v381 = vld [vmem:[#allocation3 + $0x2c0] sm:$0xff]
    %v382 = vld [vmem:[#allocation3 + $0x2c8] sm:$0xff]
    %v383 = vld [vmem:[#allocation3 + $0x2d0] sm:$0xff]
    %v384 = vld [vmem:[#allocation3 + $0x2d8] sm:$0xff]
    %v385 = vld [vmem:[#allocation3 + $0x2e0] sm:$0xff]
    %v386 = vld [vmem:[#allocation3 + $0x2e8] sm:$0xff]
    %v387 = vld [vmem:[#allocation3 + $0x2f0] sm:$0xff]
    %v388 = vld [vmem:[#allocation3 + $0x2f8] sm:$0xff]
    %389 = vmatpush.msra.mxu0 %v323
    %390 = vmatpush.msra.mxu0 %v321
    %391 = vmatpush.msra.mxu0 %v319
    %392 = vmatpush.msra.mxu0 %v317
    %393 = vmatpush.msra.mxu0 %v315
    %394 = vmatpush.msra.mxu0 %v313
    %395 = vmatpush.msra.mxu0 %v311
    %396 = vmatpush.msra.mxu0 %v309
    %397 = vmatpush.msra.mxu0 %v307
    %398 = vmatpush.msra.mxu0 %v305
    %399 = vmatpush.msra.mxu0 %v303
    %400 = vmatpush.msra.mxu0 %v301
    %401 = vmatpush.msra.mxu0 %v299
    %402 = vmatpush.msra.mxu0 %v297
    %403 = vmatpush.msra.mxu0 %v295
    %404 = vmatpush.msra.mxu0 %v293
    %405 = vmatmul.f32.gmra.mxu0 %v269
    %v406 = vpop.f32.mrf.mxu0
    %v407 = vadd.f32 0.0, %v406
    %408 = vmatmul.f32.gmra.mxu0 %v272
    %v409 = vpop.f32.mrf.mxu0
    %v410 = vadd.f32 0.0, %v409
    %411 = vmatmul.f32.gmra.mxu0 %v275
    %v412 = vpop.f32.mrf.mxu0
    %v413 = vadd.f32 0.0, %v412
    %414 = vmatmul.f32.gmra.mxu0 %v278
    %v415 = vpop.f32.mrf.mxu0
    %v416 = vadd.f32 0.0, %v415
    %417 = vmatmul.f32.gmra.mxu0 %v281
    %v418 = vpop.f32.mrf.mxu0
    %v419 = vadd.f32 0.0, %v418
    %420 = vmatmul.f32.gmra.mxu0 %v284
    %v421 = vpop.f32.mrf.mxu0
    %v422 = vadd.f32 0.0, %v421
    %423 = vmatmul.f32.gmra.mxu0 %v287
    %v424 = vpop.f32.mrf.mxu0
    %v425 = vadd.f32 0.0, %v424
    %426 = vmatmul.f32.gmra.mxu0 %v290
    %v427 = vpop.f32.mrf.mxu0
    %v428 = vadd.f32 0.0, %v427
    %429 = vdwg.mxu0
    %430 = vmatpush.msra.mxu0 %v355
    %431 = vmatpush.msra.mxu0 %v353
    %432 = vmatpush.msra.mxu0 %v351
    %433 = vmatpush.msra.mxu0 %v349
    %434 = vmatpush.msra.mxu0 %v347
    %435 = vmatpush.msra.mxu0 %v345
    %436 = vmatpush.msra.mxu0 %v343
    %437 = vmatpush.msra.mxu0 %v341
    %438 = vmatpush.msra.mxu0 %v339
    %439 = vmatpush.msra.mxu0 %v337
    %440 = vmatpush.msra.mxu0 %v335
    %441 = vmatpush.msra.mxu0 %v333
    %442 = vmatpush.msra.mxu0 %v331
    %443 = vmatpush.msra.mxu0 %v329
    %444 = vmatpush.msra.mxu0 %v327
    %445 = vmatpush.msra.mxu0 %v325
    %446 = vmatmul.f32.gmra.mxu0 %v270
    %v447 = vpop.f32.mrf.mxu0
    %v448 = vadd.f32 %v407, %v447
    %449 = vmatmul.f32.gmra.mxu0 %v273
    %v450 = vpop.f32.mrf.mxu0
    %v451 = vadd.f32 %v410, %v450
    %452 = vmatmul.f32.gmra.mxu0 %v276
    %v453 = vpop.f32.mrf.mxu0
    %v454 = vadd.f32 %v413, %v453
    %455 = vmatmul.f32.gmra.mxu0 %v279
    %v456 = vpop.f32.mrf.mxu0
    %v457 = vadd.f32 %v416, %v456
    %458 = vmatmul.f32.gmra.mxu0 %v282
    %v459 = vpop.f32.mrf.mxu0
    %v460 = vadd.f32 %v419, %v459
    %461 = vmatmul.f32.gmra.mxu0 %v285
    %v462 = vpop.f32.mrf.mxu0
    %v463 = vadd.f32 %v422, %v462
    %464 = vmatmul.f32.gmra.mxu0 %v288
    %v465 = vpop.f32.mrf.mxu0
    %v466 = vadd.f32 %v425, %v465
    %467 = vmatmul.f32.gmra.mxu0 %v291
    %v468 = vpop.f32.mrf.mxu0
    %v469 = vadd.f32 %v428, %v468
    %470 = vdwg.mxu0
    %471 = vmatpush.msra.mxu0 %v387
    %472 = vmatpush.msra.mxu0 %v385
    %473 = vmatpush.msra.mxu0 %v383
    %474 = vmatpush.msra.mxu0 %v381
    %475 = vmatpush.msra.mxu0 %v379
    %476 = vmatpush.msra.mxu0 %v377
    %477 = vmatpush.msra.mxu0 %v375
    %478 = vmatpush.msra.mxu0 %v373
    %479 = vmatpush.msra.mxu0 %v371
    %480 = vmatpush.msra.mxu0 %v369
    %481 = vmatpush.msra.mxu0 %v367
    %482 = vmatpush.msra.mxu0 %v365
    %483 = vmatpush.msra.mxu0 %v363
    %484 = vmatpush.msra.mxu0 %v361
    %485 = vmatpush.msra.mxu0 %v359
    %486 = vmatpush.msra.mxu0 %v357
    %487 = vmatmul.f32.gmra.mxu0 %v271
    %v488 = vpop.f32.mrf.mxu0
    %v489 = vadd.f32 %v448, %v488
    %490 = vmatmul.f32.gmra.mxu0 %v274
    %v491 = vpop.f32.mrf.mxu0
    %v492 = vadd.f32 %v451, %v491
    %493 = vmatmul.f32.gmra.mxu0 %v277
    %v494 = vpop.f32.mrf.mxu0
    %v495 = vadd.f32 %v454, %v494
    %496 = vmatmul.f32.gmra.mxu0 %v280
    %v497 = vpop.f32.mrf.mxu0
    %v498 = vadd.f32 %v457, %v497
    %499 = vmatmul.f32.gmra.mxu0 %v283
    %v500 = vpop.f32.mrf.mxu0
    %v501 = vadd.f32 %v460, %v500
    %502 = vmatmul.f32.gmra.mxu0 %v286
    %v503 = vpop.f32.mrf.mxu0
    %v504 = vadd.f32 %v463, %v503
    %505 = vmatmul.f32.gmra.mxu0 %v289
    %v506 = vpop.f32.mrf.mxu0
    %v507 = vadd.f32 %v466, %v506
    %508 = vmatmul.f32.gmra.mxu0 %v292
    %v509 = vpop.f32.mrf.mxu0
    %v510 = vadd.f32 %v469, %v509
    %511 = vdwg.mxu0
    %512 = vmatpush.msra.mxu0 %v324
    %513 = vmatpush.msra.mxu0 %v322
    %514 = vmatpush.msra.mxu0 %v320
    %515 = vmatpush.msra.mxu0 %v318
    %516 = vmatpush.msra.mxu0 %v316
    %517 = vmatpush.msra.mxu0 %v314
    %518 = vmatpush.msra.mxu0 %v312
    %519 = vmatpush.msra.mxu0 %v310
    %520 = vmatpush.msra.mxu0 %v308
    %521 = vmatpush.msra.mxu0 %v306
    %522 = vmatpush.msra.mxu0 %v304
    %523 = vmatpush.msra.mxu0 %v302
    %524 = vmatpush.msra.mxu0 %v300
    %525 = vmatpush.msra.mxu0 %v298
    %526 = vmatpush.msra.mxu0 %v296
    %527 = vmatpush.msra.mxu0 %v294
    %528 = vmatmul.f32.gmra.mxu0 %v269
    %v529 = vpop.f32.mrf.mxu0
    %v530 = vadd.f32 0.0, %v529
    %531 = vmatmul.f32.gmra.mxu0 %v272
    %v532 = vpop.f32.mrf.mxu0
    %v533 = vadd.f32 0.0, %v532
    %534 = vmatmul.f32.gmra.mxu0 %v275
    %v535 = vpop.f32.mrf.mxu0
    %v536 = vadd.f32 0.0, %v535
    %537 = vmatmul.f32.gmra.mxu0 %v278
    %v538 = vpop.f32.mrf.mxu0
    %v539 = vadd.f32 0.0, %v538
    %540 = vmatmul.f32.gmra.mxu0 %v281
    %v541 = vpop.f32.mrf.mxu0
    %v542 = vadd.f32 0.0, %v541
    %543 = vmatmul.f32.gmra.mxu0 %v284
    %v544 = vpop.f32.mrf.mxu0
    %v545 = vadd.f32 0.0, %v544
    %546 = vmatmul.f32.gmra.mxu0 %v287
    %v547 = vpop.f32.mrf.mxu0
    %v548 = vadd.f32 0.0, %v547
    %549 = vmatmul.f32.gmra.mxu0 %v290
    %v550 = vpop.f32.mrf.mxu0
    %v551 = vadd.f32 0.0, %v550
    %552 = vdwg.mxu0
    %553 = vmatpush.msra.mxu0 %v356
    %554 = vmatpush.msra.mxu0 %v354
    %555 = vmatpush.msra.mxu0 %v352
    %556 = vmatpush.msra.mxu0 %v350
    %557 = vmatpush.msra.mxu0 %v348
    %558 = vmatpush.msra.mxu0 %v346
    %559 = vmatpush.msra.mxu0 %v344
    %560 = vmatpush.msra.mxu0 %v342
    %561 = vmatpush.msra.mxu0 %v340
    %562 = vmatpush.msra.mxu0 %v338
    %563 = vmatpush.msra.mxu0 %v336
    %564 = vmatpush.msra.mxu0 %v334
    %565 = vmatpush.msra.mxu0 %v332
    %566 = vmatpush.msra.mxu0 %v330
    %567 = vmatpush.msra.mxu0 %v328
    %568 = vmatpush.msra.mxu0 %v326
    %569 = vmatmul.f32.gmra.mxu0 %v270
    %v570 = vpop.f32.mrf.mxu0
    %v571 = vadd.f32 %v530, %v570
    %572 = vmatmul.f32.gmra.mxu0 %v273
    %v573 = vpop.f32.mrf.mxu0
    %v574 = vadd.f32 %v533, %v573
    %575 = vmatmul.f32.gmra.mxu0 %v276
    %v576 = vpop.f32.mrf.mxu0
    %v577 = vadd.f32 %v536, %v576
    %578 = vmatmul.f32.gmra.mxu0 %v279
    %v579 = vpop.f32.mrf.mxu0
    %v580 = vadd.f32 %v539, %v579
    %581 = vmatmul.f32.gmra.mxu0 %v282
    %v582 = vpop.f32.mrf.mxu0
    %v583 = vadd.f32 %v542, %v582
    %584 = vmatmul.f32.gmra.mxu0 %v285
    %v585 = vpop.f32.mrf.mxu0
    %v586 = vadd.f32 %v545, %v585
    %587 = vmatmul.f32.gmra.mxu0 %v288
    %v588 = vpop.f32.mrf.mxu0
    %v589 = vadd.f32 %v548, %v588
    %590 = vmatmul.f32.gmra.mxu0 %v291
    %v591 = vpop.f32.mrf.mxu0
    %v592 = vadd.f32 %v551, %v591
    %593 = vdwg.mxu0
    %594 = vmatpush.msra.mxu0 %v388
    %595 = vmatpush.msra.mxu0 %v386
    %596 = vmatpush.msra.mxu0 %v384
    %597 = vmatpush.msra.mxu0 %v382
    %598 = vmatpush.msra.mxu0 %v380
    %599 = vmatpush.msra.mxu0 %v378
    %600 = vmatpush.msra.mxu0 %v376
    %601 = vmatpush.msra.mxu0 %v374
    %602 = vmatpush.msra.mxu0 %v372
    %603 = vmatpush.msra.mxu0 %v370
    %604 = vmatpush.msra.mxu0 %v368
    %605 = vmatpush.msra.mxu0 %v366
    %606 = vmatpush.msra.mxu0 %v364
    %607 = vmatpush.msra.mxu0 %v362
    %608 = vmatpush.msra.mxu0 %v360
    %609 = vmatpush.msra.mxu0 %v358
    %610 = vmatmul.f32.gmra.mxu0 %v271
    %v611 = vpop.f32.mrf.mxu0
    %v612 = vadd.f32 %v571, %v611
    %613 = vmatmul.f32.gmra.mxu0 %v274
    %v614 = vpop.f32.mrf.mxu0
    %v615 = vadd.f32 %v574, %v614
    %616 = vmatmul.f32.gmra.mxu0 %v277
    %v617 = vpop.f32.mrf.mxu0
    %v618 = vadd.f32 %v577, %v617
    %619 = vmatmul.f32.gmra.mxu0 %v280
    %v620 = vpop.f32.mrf.mxu0
    %v621 = vadd.f32 %v580, %v620
    %622 = vmatmul.f32.gmra.mxu0 %v283
    %v623 = vpop.f32.mrf.mxu0
    %v624 = vadd.f32 %v583, %v623
    %625 = vmatmul.f32.gmra.mxu0 %v286
    %v626 = vpop.f32.mrf.mxu0
    %v627 = vadd.f32 %v586, %v626
    %628 = vmatmul.f32.gmra.mxu0 %v289
    %v629 = vpop.f32.mrf.mxu0
    %v630 = vadd.f32 %v589, %v629
    %631 = vmatmul.f32.gmra.mxu0 %v292
    %v632 = vpop.f32.mrf.mxu0
    %v633 = vadd.f32 %v592, %v632
    %634 = vdwg.mxu0
    %v635 = vld [vmem:[%s3] sm:$0xff]
    %v636 = vld [vmem:[%s3 + $0x8] sm:$0xff]
    %v637 = vld [vmem:[%s3 + $0x10] sm:$0xff]
    %v638 = vld [vmem:[%s3 + $0x18] sm:$0xff]
    %v639 = vld [vmem:[%s3 + $0x20] sm:$0xff]
    %v640 = vld [vmem:[%s3 + $0x28] sm:$0xff]
    %v641 = vld [vmem:[%s3 + $0x30] sm:$0xff]
    %v642 = vld [vmem:[%s3 + $0x38] sm:$0xff]
    %v643 = vld [vmem:[%s3 + $0x40] sm:$0xff]
    %v644 = vld [vmem:[%s3 + $0x48] sm:$0xff]
    %v645 = vld [vmem:[%s3 + $0x50] sm:$0xff]
    %v646 = vld [vmem:[%s3 + $0x58] sm:$0xff]
    %v647 = vld [vmem:[%s3 + $0x60] sm:$0xff]
    %v648 = vld [vmem:[%s3 + $0x68] sm:$0xff]
    %v649 = vld [vmem:[%s3 + $0x70] sm:$0xff]
    %v650 = vld [vmem:[%s3 + $0x78] sm:$0xff]
    %v651 = vld [vmem:[%s3 + $0x80] sm:$0xff]
    %v652 = vld [vmem:[%s3 + $0x88] sm:$0xff]
    %v653 = vld [vmem:[%s3 + $0x90] sm:$0xff]
    %v654 = vld [vmem:[%s3 + $0x98] sm:$0xff]
    %v655 = vld [vmem:[%s3 + $0xa0] sm:$0xff]
    %v656 = vld [vmem:[%s3 + $0xa8] sm:$0xff]
    %v657 = vld [vmem:[%s3 + $0xb0] sm:$0xff]
    %v658 = vld [vmem:[%s3 + $0xb8] sm:$0xff]
    %v659 = vld [vmem:[%s3 + $0xc0] sm:$0xff]
    %v660 = vld [vmem:[%s3 + $0xc8] sm:$0xff]
    %v661 = vld [vmem:[%s3 + $0xd0] sm:$0xff]
    %v662 = vld [vmem:[%s3 + $0xd8] sm:$0xff]
    %v663 = vld [vmem:[%s3 + $0xe0] sm:$0xff]
    %v664 = vld [vmem:[%s3 + $0xe8] sm:$0xff]
    %v665 = vld [vmem:[%s3 + $0xf0] sm:$0xff]
    %v666 = vld [vmem:[%s3 + $0xf8] sm:$0xff]
    %v667 = vld [vmem:[%s3 + $0x100] sm:$0xff]
    %v668 = vld [vmem:[%s3 + $0x108] sm:$0xff]
    %v669 = vld [vmem:[%s3 + $0x110] sm:$0xff]
    %v670 = vld [vmem:[%s3 + $0x118] sm:$0xff]
    %v671 = vld [vmem:[%s3 + $0x120] sm:$0xff]
    %v672 = vld [vmem:[%s3 + $0x128] sm:$0xff]
    %v673 = vld [vmem:[%s3 + $0x130] sm:$0xff]
    %v674 = vld [vmem:[%s3 + $0x138] sm:$0xff]
    %v675 = vld [vmem:[%s3 + $0x140] sm:$0xff]
    %v676 = vld [vmem:[%s3 + $0x148] sm:$0xff]
    %v677 = vld [vmem:[%s3 + $0x150] sm:$0xff]
    %v678 = vld [vmem:[%s3 + $0x158] sm:$0xff]
    %v679 = vld [vmem:[%s3 + $0x160] sm:$0xff]
    %v680 = vld [vmem:[%s3 + $0x168] sm:$0xff]
    %v681 = vld [vmem:[%s3 + $0x170] sm:$0xff]
    %v682 = vld [vmem:[%s3 + $0x178] sm:$0xff]
    %683 = vmatpush.msra.mxu0 %v650
    %684 = vmatpush.msra.mxu0 %v649
    %685 = vmatpush.msra.mxu0 %v648
    %686 = vmatpush.msra.mxu0 %v647
    %687 = vmatpush.msra.mxu0 %v646
    %688 = vmatpush.msra.mxu0 %v645
    %689 = vmatpush.msra.mxu0 %v644
    %690 = vmatpush.msra.mxu0 %v643
    %691 = vmatpush.msra.mxu0 %v642
    %692 = vmatpush.msra.mxu0 %v641
    %693 = vmatpush.msra.mxu0 %v640
    %694 = vmatpush.msra.mxu0 %v639
    %695 = vmatpush.msra.mxu0 %v638
    %696 = vmatpush.msra.mxu0 %v637
    %697 = vmatpush.msra.mxu0 %v636
    %698 = vmatpush.msra.mxu0 %v635
    %699 = vmatmul.f32.gmra.mxu0 %v269
    %v700 = vpop.f32.mrf.mxu0
    %v701 = vadd.f32 0.0, %v700
    %702 = vmatmul.f32.gmra.mxu0 %v272
    %v703 = vpop.f32.mrf.mxu0
    %v704 = vadd.f32 0.0, %v703
    %705 = vmatmul.f32.gmra.mxu0 %v275
    %v706 = vpop.f32.mrf.mxu0
    %v707 = vadd.f32 0.0, %v706
    %708 = vmatmul.f32.gmra.mxu0 %v278
    %v709 = vpop.f32.mrf.mxu0
    %v710 = vadd.f32 0.0, %v709
    %711 = vmatmul.f32.gmra.mxu0 %v281
    %v712 = vpop.f32.mrf.mxu0
    %v713 = vadd.f32 0.0, %v712
    %714 = vmatmul.f32.gmra.mxu0 %v284
    %v715 = vpop.f32.mrf.mxu0
    %v716 = vadd.f32 0.0, %v715
    %717 = vmatmul.f32.gmra.mxu0 %v287
    %v718 = vpop.f32.mrf.mxu0
    %v719 = vadd.f32 0.0, %v718
    %720 = vmatmul.f32.gmra.mxu0 %v290
    %v721 = vpop.f32.mrf.mxu0
    %v722 = vadd.f32 0.0, %v721
    %723 = vdwg.mxu0
    %724 = vmatpush.msra.mxu0 %v666
    %725 = vmatpush.msra.mxu0 %v665
    %726 = vmatpush.msra.mxu0 %v664
    %727 = vmatpush.msra.mxu0 %v663
    %728 = vmatpush.msra.mxu0 %v662
    %729 = vmatpush.msra.mxu0 %v661
    %730 = vmatpush.msra.mxu0 %v660
    %731 = vmatpush.msra.mxu0 %v659
    %732 = vmatpush.msra.mxu0 %v658
    %733 = vmatpush.msra.mxu0 %v657
    %734 = vmatpush.msra.mxu0 %v656
    %735 = vmatpush.msra.mxu0 %v655
    %736 = vmatpush.msra.mxu0 %v654
    %737 = vmatpush.msra.mxu0 %v653
    %738 = vmatpush.msra.mxu0 %v652
    %739 = vmatpush.msra.mxu0 %v651
    %740 = vmatmul.f32.gmra.mxu0 %v270
    %v741 = vpop.f32.mrf.mxu0
    %v742 = vadd.f32 %v701, %v741
    %743 = vmatmul.f32.gmra.mxu0 %v273
    %v744 = vpop.f32.mrf.mxu0
    %v745 = vadd.f32 %v704, %v744
    %746 = vmatmul.f32.gmra.mxu0 %v276
    %v747 = vpop.f32.mrf.mxu0
    %v748 = vadd.f32 %v707, %v747
    %749 = vmatmul.f32.gmra.mxu0 %v279
    %v750 = vpop.f32.mrf.mxu0
    %v751 = vadd.f32 %v710, %v750
    %752 = vmatmul.f32.gmra.mxu0 %v282
    %v753 = vpop.f32.mrf.mxu0
    %v754 = vadd.f32 %v713, %v753
    %755 = vmatmul.f32.gmra.mxu0 %v285
    %v756 = vpop.f32.mrf.mxu0
    %v757 = vadd.f32 %v716, %v756
    %758 = vmatmul.f32.gmra.mxu0 %v288
    %v759 = vpop.f32.mrf.mxu0
    %v760 = vadd.f32 %v719, %v759
    %761 = vmatmul.f32.gmra.mxu0 %v291
    %v762 = vpop.f32.mrf.mxu0
    %v763 = vadd.f32 %v722, %v762
    %764 = vdwg.mxu0
    %765 = vmatpush.msra.mxu0 %v682
    %766 = vmatpush.msra.mxu0 %v681
    %767 = vmatpush.msra.mxu0 %v680
    %768 = vmatpush.msra.mxu0 %v679
    %769 = vmatpush.msra.mxu0 %v678
    %770 = vmatpush.msra.mxu0 %v677
    %771 = vmatpush.msra.mxu0 %v676
    %772 = vmatpush.msra.mxu0 %v675
    %773 = vmatpush.msra.mxu0 %v674
    %774 = vmatpush.msra.mxu0 %v673
    %775 = vmatpush.msra.mxu0 %v672
    %776 = vmatpush.msra.mxu0 %v671
    %777 = vmatpush.msra.mxu0 %v670
    %778 = vmatpush.msra.mxu0 %v669
    %779 = vmatpush.msra.mxu0 %v668
    %780 = vmatpush.msra.mxu0 %v667
    %781 = vmatmul.f32.gmra.mxu0 %v271
    %v782 = vpop.f32.mrf.mxu0
    %v783 = vadd.f32 %v742, %v782
    %784 = vmatmul.f32.gmra.mxu0 %v274
    %v785 = vpop.f32.mrf.mxu0
    %v786 = vadd.f32 %v745, %v785
    %787 = vmatmul.f32.gmra.mxu0 %v277
    %v788 = vpop.f32.mrf.mxu0
    %v789 = vadd.f32 %v748, %v788
    %790 = vmatmul.f32.gmra.mxu0 %v280
    %v791 = vpop.f32.mrf.mxu0
    %v792 = vadd.f32 %v751, %v791
    %793 = vmatmul.f32.gmra.mxu0 %v283
    %v794 = vpop.f32.mrf.mxu0
    %v795 = vadd.f32 %v754, %v794
    %796 = vmatmul.f32.gmra.mxu0 %v286
    %v797 = vpop.f32.mrf.mxu0
    %v798 = vadd.f32 %v757, %v797
    %799 = vmatmul.f32.gmra.mxu0 %v289
    %v800 = vpop.f32.mrf.mxu0
    %v801 = vadd.f32 %v760, %v800
    %802 = vmatmul.f32.gmra.mxu0 %v292
    %v803 = vpop.f32.mrf.mxu0
    %v804 = vadd.f32 %v763, %v803
    %805 = vdwg.mxu0
    %v806 = vmax.f32 %v783, 0.0
    %v807 = vmax.f32 %v786, 0.0
    %v808 = vmax.f32 %v789, 0.0
    %v809 = vmax.f32 %v792, 0.0
    %v810 = vmax.f32 %v795, 0.0
    %v811 = vmax.f32 %v798, 0.0
    %v812 = vmax.f32 %v801, 0.0
    %v813 = vmax.f32 %v804, 0.0
    %v814 = vld [vmem:[%s2 + $0x20] sm:$0x1]
    %v815 = vperm.slane %v814, 0
    %v816 = vmul.f32 %v806, %v815
    %v817 = vmul.f32 %v807, %v815
    %v818 = vmul.f32 %v808, %v815
    %v819 = vmul.f32 %v809, %v815
    %v820 = vmul.f32 %v810, %v815
    %v821 = vmul.f32 %v811, %v815
    %v822 = vmul.f32 %v812, %v815
    %v823 = vmul.f32 %v813, %v815
    %vm824 = vcmask 261120
    %v825 = vsel %vm824, %v816, 0.0
    %826 = vadd.xlane.f32.xlu0 %v825
    %v827 = vpop.xlane.xlu0 %826
    %v828 = vsel %vm824, %v817, 0.0
    %829 = vadd.xlane.f32.xlu0 %v828
    %v830 = vpop.xlane.xlu0 %829
    %v831 = vsel %vm824, %v818, 0.0
    %832 = vadd.xlane.f32.xlu0 %v831
    %v833 = vpop.xlane.xlu0 %832
    %v834 = vsel %vm824, %v819, 0.0
    %835 = vadd.xlane.f32.xlu0 %v834
    %v836 = vpop.xlane.xlu0 %835
    %v837 = vsel %vm824, %v820, 0.0
    %838 = vadd.xlane.f32.xlu0 %v837
    %v839 = vpop.xlane.xlu0 %838
    %v840 = vsel %vm824, %v821, 0.0
    %841 = vadd.xlane.f32.xlu0 %v840
    %v842 = vpop.xlane.xlu0 %841
    %v843 = vsel %vm824, %v822, 0.0
    %844 = vadd.xlane.f32.xlu0 %v843
    %v845 = vpop.xlane.xlu0 %844
    %v846 = vsel %vm824, %v823, 0.0
    %847 = vadd.xlane.f32.xlu0 %v846
    %v848 = vpop.xlane.xlu0 %847
    %v849 = vadd.f32 %v827, %v815
    %v850 = vadd.f32 %v830, %v815
    %v851 = vadd.f32 %v833, %v815
    %v852 = vadd.f32 %v836, %v815
    %v853 = vadd.f32 %v839, %v815
    %v854 = vadd.f32 %v842, %v815
    %v855 = vadd.f32 %v845, %v815
    %v856 = vadd.f32 %v848, %v815
    %v857 = vsub.f32 0.0, %v849
    %v858 = vsub.f32 0.0, %v850
    %v859 = vsub.f32 0.0, %v851
    %v860 = vsub.f32 0.0, %v852
    %v861 = vsub.f32 0.0, %v853
    %v862 = vsub.f32 0.0, %v854
    %v863 = vsub.f32 0.0, %v855
    %v864 = vsub.f32 0.0, %v856
    %v865 = vmul.f32 %v857, 1.442695
    %v866 = vpow.pop %v865
    %v867 = vmul.f32 %v858, 1.442695
    %v868 = vpow.pop %v867
    %v869 = vmul.f32 %v859, 1.442695
    %v870 = vpow.pop %v869
    %v871 = vmul.f32 %v860, 1.442695
    %v872 = vpow.pop %v871
    %v873 = vmul.f32 %v861, 1.442695
    %v874 = vpow.pop %v873
    %v875 = vmul.f32 %v862, 1.442695
    %v876 = vpow.pop %v875
    %v877 = vmul.f32 %v863, 1.442695
    %v878 = vpow.pop %v877
    %v879 = vmul.f32 %v864, 1.442695
    %v880 = vpow.pop %v879
    %v881 = vadd.f32 %v866, 1.0
    %v882 = vadd.f32 %v868, 1.0
    %v883 = vadd.f32 %v870, 1.0
    %v884 = vadd.f32 %v872, 1.0
    %v885 = vadd.f32 %v874, 1.0
    %v886 = vadd.f32 %v876, 1.0
    %v887 = vadd.f32 %v878, 1.0
    %v888 = vadd.f32 %v880, 1.0
    %v889 = vrcp.pop %v881
    %v890 = vmul.f32 %v881, %v889
    %v891 = vsub.f32 1.0, %v890
    %v892 = vmul.f32 %v889, %v891
    %v893 = vadd.f32 %v889, %v892
    %vm894 = vweird.f32 %v881
    %vm895 = vweird.f32 %v889
    %vm896 = vmor %vm894, %vm895
    %v897 = vsel %vm896, %v889, %v893
    %v898 = vand.u32 2147483647, %v881
    %vm899 = vcmp.eq.f32.partialorder %v898, 8.507059e+37
    %v900 = vand.u32 %v881, 2147483648
    %v901 = vor.u32 1.1754944e-38, %v900
    %v902 = vsel %vm899, %v901, %v897
    %v903 = vmul.f32 1.0, %v902
    %v904 = vrcp.pop %v882
    %v905 = vmul.f32 %v882, %v904
    %v906 = vsub.f32 1.0, %v905
    %v907 = vmul.f32 %v904, %v906
    %v908 = vadd.f32 %v904, %v907
    %vm909 = vweird.f32 %v882
    %vm910 = vweird.f32 %v904
    %vm911 = vmor %vm909, %vm910
    %v912 = vsel %vm911, %v904, %v908
    %v913 = vand.u32 2147483647, %v882
    %vm914 = vcmp.eq.f32.partialorder %v913, 8.507059e+37
    %v915 = vand.u32 %v882, 2147483648
    %v916 = vor.u32 1.1754944e-38, %v915
    %v917 = vsel %vm914, %v916, %v912
    %v918 = vmul.f32 1.0, %v917
    %v919 = vrcp.pop %v883
    %v920 = vmul.f32 %v883, %v919
    %v921 = vsub.f32 1.0, %v920
    %v922 = vmul.f32 %v919, %v921
    %v923 = vadd.f32 %v919, %v922
    %vm924 = vweird.f32 %v883
    %vm925 = vweird.f32 %v919
    %vm926 = vmor %vm924, %vm925
    %v927 = vsel %vm926, %v919, %v923
    %v928 = vand.u32 2147483647, %v883
    %vm929 = vcmp.eq.f32.partialorder %v928, 8.507059e+37
    %v930 = vand.u32 %v883, 2147483648
    %v931 = vor.u32 1.1754944e-38, %v930
    %v932 = vsel %vm929, %v931, %v927
    %v933 = vmul.f32 1.0, %v932
    %v934 = vrcp.pop %v884
    %v935 = vmul.f32 %v884, %v934
    %v936 = vsub.f32 1.0, %v935
    %v937 = vmul.f32 %v934, %v936
    %v938 = vadd.f32 %v934, %v937
    %vm939 = vweird.f32 %v884
    %vm940 = vweird.f32 %v934
    %vm941 = vmor %vm939, %vm940
    %v942 = vsel %vm941, %v934, %v938
    %v943 = vand.u32 2147483647, %v884
    %vm944 = vcmp.eq.f32.partialorder %v943, 8.507059e+37
    %v945 = vand.u32 %v884, 2147483648
    %v946 = vor.u32 1.1754944e-38, %v945
    %v947 = vsel %vm944, %v946, %v942
    %v948 = vmul.f32 1.0, %v947
    %v949 = vrcp.pop %v885
    %v950 = vmul.f32 %v885, %v949
    %v951 = vsub.f32 1.0, %v950
    %v952 = vmul.f32 %v949, %v951
    %v953 = vadd.f32 %v949, %v952
    %vm954 = vweird.f32 %v885
    %vm955 = vweird.f32 %v949
    %vm956 = vmor %vm954, %vm955
    %v957 = vsel %vm956, %v949, %v953
    %v958 = vand.u32 2147483647, %v885
    %vm959 = vcmp.eq.f32.partialorder %v958, 8.507059e+37
    %v960 = vand.u32 %v885, 2147483648
    %v961 = vor.u32 1.1754944e-38, %v960
    %v962 = vsel %vm959, %v961, %v957
    %v963 = vmul.f32 1.0, %v962
    %v964 = vrcp.pop %v886
    %v965 = vmul.f32 %v886, %v964
    %v966 = vsub.f32 1.0, %v965
    %v967 = vmul.f32 %v964, %v966
    %v968 = vadd.f32 %v964, %v967
    %vm969 = vweird.f32 %v886
    %vm970 = vweird.f32 %v964
    %vm971 = vmor %vm969, %vm970
    %v972 = vsel %vm971, %v964, %v968
    %v973 = vand.u32 2147483647, %v886
    %vm974 = vcmp.eq.f32.partialorder %v973, 8.507059e+37
    %v975 = vand.u32 %v886, 2147483648
    %v976 = vor.u32 1.1754944e-38, %v975
    %v977 = vsel %vm974, %v976, %v972
    %v978 = vmul.f32 1.0, %v977
    %v979 = vrcp.pop %v887
    %v980 = vmul.f32 %v887, %v979
    %v981 = vsub.f32 1.0, %v980
    %v982 = vmul.f32 %v979, %v981
    %v983 = vadd.f32 %v979, %v982
    %vm984 = vweird.f32 %v887
    %vm985 = vweird.f32 %v979
    %vm986 = vmor %vm984, %vm985
    %v987 = vsel %vm986, %v979, %v983
    %v988 = vand.u32 2147483647, %v887
    %vm989 = vcmp.eq.f32.partialorder %v988, 8.507059e+37
    %v990 = vand.u32 %v887, 2147483648
    %v991 = vor.u32 1.1754944e-38, %v990
    %v992 = vsel %vm989, %v991, %v987
    %v993 = vmul.f32 1.0, %v992
    %v994 = vrcp.pop %v888
    %v995 = vmul.f32 %v888, %v994
    %v996 = vsub.f32 1.0, %v995
    %v997 = vmul.f32 %v994, %v996
    %v998 = vadd.f32 %v994, %v997
    %vm999 = vweird.f32 %v888
    %vm1000 = vweird.f32 %v994
    %vm1001 = vmor %vm999, %vm1000
    %v1002 = vsel %vm1001, %v994, %v998
    %v1003 = vand.u32 2147483647, %v888
    %vm1004 = vcmp.eq.f32.partialorder %v1003, 8.507059e+37
    %v1005 = vand.u32 %v888, 2147483648
    %v1006 = vor.u32 1.1754944e-38, %v1005
    %v1007 = vsel %vm1004, %v1006, %v1002
    %v1008 = vmul.f32 1.0, %v1007
    %1010 = vset.pattern.permute.xlu0 32
    %1011 = vperm.xlu0 %1010, %v903
    %v1012 = vpop.permute.xlu0 %1011
    %1015 = vset.pattern.permute.xlu0 32
    %1016 = vperm.xlu0 %1015, %v918
    %v1017 = vpop.permute.xlu0 %1016
    %1020 = vset.pattern.permute.xlu0 32
    %1021 = vperm.xlu0 %1020, %v933
    %v1022 = vpop.permute.xlu0 %1021
    %1025 = vset.pattern.permute.xlu0 32
    %1026 = vperm.xlu0 %1025, %v948
    %v1027 = vpop.permute.xlu0 %1026
    %1030 = vset.pattern.permute.xlu0 32
    %1031 = vperm.xlu0 %1030, %v963
    %v1032 = vpop.permute.xlu0 %1031
    %1035 = vset.pattern.permute.xlu0 32
    %1036 = vperm.xlu0 %1035, %v978
    %v1037 = vpop.permute.xlu0 %1036
    %1040 = vset.pattern.permute.xlu0 32
    %1041 = vperm.xlu0 %1040, %v993
    %v1042 = vpop.permute.xlu0 %1041
    %1045 = vset.pattern.permute.xlu0 32
    %1046 = vperm.xlu0 %1045, %v1008
    %v1047 = vpop.permute.xlu0 %1046
    %v1049 = vmul.f32 %v1012, %v489
    %v1050 = vmul.f32 %v1017, %v492
    %v1051 = vmul.f32 %v1022, %v495
    %v1052 = vmul.f32 %v1027, %v498
    %v1053 = vmul.f32 %v1032, %v501
    %v1054 = vmul.f32 %v1037, %v504
    %v1055 = vmul.f32 %v1042, %v507
    %v1056 = vmul.f32 %v1047, %v510
    %v1057 = vsub.f32 1.0, %v903
    %v1058 = vsub.f32 1.0, %v918
    %v1059 = vsub.f32 1.0, %v933
    %v1060 = vsub.f32 1.0, %v948
    %v1061 = vsub.f32 1.0, %v963
    %v1062 = vsub.f32 1.0, %v978
    %v1063 = vsub.f32 1.0, %v993
    %v1064 = vsub.f32 1.0, %v1008
    %1066 = vset.pattern.permute.xlu0 32
    %1067 = vperm.xlu0 %1066, %v1057
    %v1068 = vpop.permute.xlu0 %1067
    %1071 = vset.pattern.permute.xlu0 32
    %1072 = vperm.xlu0 %1071, %v1058
    %v1073 = vpop.permute.xlu0 %1072
    %1076 = vset.pattern.permute.xlu0 32
    %1077 = vperm.xlu0 %1076, %v1059
    %v1078 = vpop.permute.xlu0 %1077
    %1081 = vset.pattern.permute.xlu0 32
    %1082 = vperm.xlu0 %1081, %v1060
    %v1083 = vpop.permute.xlu0 %1082
    %1086 = vset.pattern.permute.xlu0 32
    %1087 = vperm.xlu0 %1086, %v1061
    %v1088 = vpop.permute.xlu0 %1087
    %1091 = vset.pattern.permute.xlu0 32
    %1092 = vperm.xlu0 %1091, %v1062
    %v1093 = vpop.permute.xlu0 %1092
    %1096 = vset.pattern.permute.xlu0 32
    %1097 = vperm.xlu0 %1096, %v1063
    %v1098 = vpop.permute.xlu0 %1097
    %1101 = vset.pattern.permute.xlu0 32
    %1102 = vperm.xlu0 %1101, %v1064
    %v1103 = vpop.permute.xlu0 %1102
    %v1105 = vmul.f32 %v1068, %v612
    %v1106 = vmul.f32 %v1073, %v615
    %v1107 = vmul.f32 %v1078, %v618
    %v1108 = vmul.f32 %v1083, %v621
    %v1109 = vmul.f32 %v1088, %v624
    %v1110 = vmul.f32 %v1093, %v627
    %v1111 = vmul.f32 %v1098, %v630
    %v1112 = vmul.f32 %v1103, %v633
    %v1113 = vadd.f32 %v1049, %v1105
    %v1114 = vadd.f32 %v1050, %v1106
    %v1115 = vadd.f32 %v1051, %v1107
    %v1116 = vadd.f32 %v1052, %v1108
    %v1117 = vadd.f32 %v1053, %v1109
    %v1118 = vadd.f32 %v1054, %v1110
    %v1119 = vadd.f32 %v1055, %v1111
    %v1120 = vadd.f32 %v1056, %v1112
    %v1121 = vlaneseq
    %v1122 = vand.u32 %v1121, 127
    %vm1123 = vcmp.lt.s32.totalorder %v1122, 8
    %v1124 = vsel %vm1123, %v1113, %v1012
    %v1125 = vsel %vm1123, %v1114, %v1017
    %v1126 = vsel %vm1123, %v1115, %v1022
    %v1127 = vsel %vm1123, %v1116, %v1027
    %v1128 = vsel %vm1123, %v1117, %v1032
    %v1129 = vsel %vm1123, %v1118, %v1037
    %v1130 = vsel %vm1123, %v1119, %v1042
    %v1131 = vsel %vm1123, %v1120, %v1047
    %1132 = vst [vmem:[%s5] sm:$0xff] %v1124
    %1133 = vst [vmem:[%s5 + $0x8] sm:$0xff] %v1125
    %1134 = vst [vmem:[%s5 + $0x10] sm:$0xff] %v1126
    %1135 = vst [vmem:[%s5 + $0x18] sm:$0xff] %v1127
    %1136 = vst [vmem:[%s5 + $0x20] sm:$0xff] %v1128
    %1137 = vst [vmem:[%s5 + $0x28] sm:$0xff] %v1129
    %1138 = vst [vmem:[%s5 + $0x30] sm:$0xff] %v1130
    %1139 = vst [vmem:[%s5 + $0x38] sm:$0xff] %v1131
    // Predicated region
    $region26: #{robust_h2gcn.1} parent=1 // pred_check
      _
    $region27: #{robust_h2gcn.1} parent=1 // pred_check_branch
      %1141 = sbr.rel (0) target = $region29
    $region28: #{robust_h2gcn.1} parent=1 // pred_region
      _
    $region29: #{robust_h2gcn.1} parent=1 // pred_fallthru
      _
    // Predicated region
    $region30: #{robust_h2gcn.1} parent=1 // pred_check
      _
    $region31: #{robust_h2gcn.1} parent=1 // pred_check_branch
      %1143 = sbr.rel (0) target = $region33
    $region32: #{robust_h2gcn.1} parent=1 // pred_region
      _
    $region33: #{robust_h2gcn.1} parent=1 // pred_fallthru
      _
    %1144 = vsyncpa [#allocation4], 1

</llo_original>
